<compile_context>
chip_gen: v7x
topology: tpu7x:2x2x1
jax: 0.10.0
libtpu: 0.0.40
codegen_flags: <defaults>
</compile_context>

<pallas_src>
import jax
import jax.numpy as jnp
from jax import lax
from jax.experimental import pallas as pl
from jax.experimental.pallas import tpu as pltpu


# ----------------------------- Pallas kernel -----------------------------

def _dseca_kernel(x_ref, at_ref, b_ref, o_ref):
    # x_ref : (B, C, L) activations                               (VMEM)
    # at_ref: (2C, C)   folded + transposed channel-conv matrix   (VMEM)
    # b_ref : (1, 1)    conv bias                                 (SMEM scalar)
    # o_ref : (B, C, L)
    xv = x_ref[...]
    gap = jnp.mean(xv, axis=2)                        # (B, C)   lane-axis reduce
    gmp = jnp.max(xv, axis=2)                         # (B, C)
    pooled = jnp.concatenate([gap, gmp], axis=1)      # (B, 2C)  lane concat

    # One MXU dot == (channel-axis conv for GAP) ++ (channel-axis conv for GMP), all batches.
    logits = jnp.dot(pooled, at_ref[...],
                     preferred_element_type=jnp.float32,
                     precision=lax.Precision.HIGHEST) + b_ref[0, 0]     # (B, C)
    mask = jax.nn.sigmoid(logits)                                       # (B, C)

    # Single full-slab broadcast multiply + one lane-dense unmasked store.
    # Re-read x_ref here (instead of reusing xv across the dot) to keep its live range short.
    o_ref[...] = x_ref[...] * mask[:, :, None]


# -------------------------- parameter folding ---------------------------

def fold_dseca_params(w3, bias, channel):
    """Fold DSECA's Conv1d(1, 1, kernel=3, stride=2, padding=1) over the channel axis —
    applied to both the GAP and GMP pooled vectors and concatenated — into a single
    transposed (2C, C) matrix + (1, 1) bias.  Done once, outside the jitted forward."""
    C = channel
    assert C % 2 == 0, "DSECA mask has 2*(C//2) channels; C must be even to match C"
    half = C // 2
    j = jnp.arange(half)[:, None]          # conv output position within one half
    i = jnp.arange(C)[None, :]             # conv input (channel) position
    t = i + 1 - 2 * j                      # tap index; valid taps 0..2 (pad=1, stride=2)
    taps = jnp.asarray(w3, jnp.float32)
    conv = jnp.where((t >= 0) & (t <= 2), taps[jnp.clip(t, 0, 2)], 0.0)  # (C//2, C)
    convT = conv.T                                                       # (C, C//2)
    z = jnp.zeros_like(convT)
    a_t = jnp.concatenate(
        [jnp.concatenate([convT, z], axis=1),   # pooled rows [0, C)  (GAP)  -> mask [0, C/2)
         jnp.concatenate([z, convT], axis=1)],  # pooled rows [C, 2C) (GMP)  -> mask [C/2, C)
        axis=0)                                 # (2C, C)
    b = jnp.asarray(bias, jnp.float32).reshape(1, 1)
    return a_t, b


# ------------------------------ wrapper ----------------------------------

def dseca_forward(x, a_t, bias11):
    B, C, L = x.shape
    return pl.pallas_call(
        _dseca_kernel,
        out_shape=jax.ShapeDtypeStruct((B, C, L), jnp.float32),
        in_specs=[pl.BlockSpec(memory_space=pltpu.MemorySpace.VMEM),
                  pl.BlockSpec(memory_space=pltpu.MemorySpace.VMEM),
                  pl.BlockSpec(memory_space=pltpu.MemorySpace.SMEM)],
        out_specs=pl.BlockSpec(memory_space=pltpu.MemorySpace.VMEM),
        # Total residency is < 100 KiB; 16 MiB documents the huge headroom even on v7x (64 MiB).
        compiler_params=pltpu.CompilerParams(vmem_limit_bytes=16 * 1024 * 1024),
    )(x, a_t, bias11)


# --------------------- pure-JAX reference (validation) -------------------

def dseca_reference(x, w3, bias):
    B, C, L = x.shape
    gap = jnp.mean(x, axis=2, keepdims=True).reshape(B, 1, C)   # AdaptiveAvgPool1d(1) + view
    gmp = jnp.max(x, axis=2, keepdims=True).reshape(B, 1, C)    # AdaptiveMaxPool1d(1) + view
    w = jnp.asarray(w3, jnp.float32).reshape(1, 1, 3)
    b = jnp.asarray(bias, jnp.float32).reshape(1, 1, 1)

    def conv(z):
        return lax.conv_general_dilated(
            z, w, window_strides=(2,), padding=[(1, 1)],
            dimension_numbers=('NCH', 'OIH', 'NCH'),
            precision=lax.Precision.HIGHEST) + b

    mask = jax.nn.sigmoid(jnp.concatenate([conv(gap), conv(gmp)], axis=2))   # (B, 1, C)
    return x * mask.reshape(B, C, 1)


# --------------------------------- main -----------------------------------

if __name__ == "__main__":
    # DSECA default channel=32; L chosen lane-dense (multiple of 128) for unmasked stores.
    B, C, L = 2, 32, 128
    key = jax.random.PRNGKey(0)
    kx, kw, kb = jax.random.split(key, 3)
    x = jax.random.normal(kx, (B, C, L), jnp.float32)
    w3 = 0.4 * jax.random.normal(kw, (3,), jnp.float32)      # Conv1d(1,1,3) weight taps
    bias = 0.1 * jax.random.normal(kb, (1,), jnp.float32)    # Conv1d bias

    a_t, b11 = fold_dseca_params(w3, bias, C)                # folded once, outside the jit

    fwd = jax.jit(dseca_forward)
    out = jax.block_until_ready(fwd(x, a_t, b11))
    assert out.shape == (B, C, L)

    ref = dseca_reference(x, w3, bias)
    err = float(jnp.max(jnp.abs(out - ref)))
    assert err < 1e-4, f"Pallas vs reference mismatch: max abs err = {err}"
    print("KERNEL_OK")
</pallas_src>

<mosaic_0001>
module attributes {stable_mosaic.version = 11 : i64} {
  func.func @_dseca_kernel(%arg0: memref<2x32x128xf32, #tpu.memory_space<vmem>>, %arg1: memref<64x32xf32, #tpu.memory_space<vmem>>, %arg2: memref<1x1xf32, #tpu.memory_space<smem>>, %arg3: memref<2x32x128xf32, #tpu.memory_space<vmem>>) attributes {dimension_semantics = [], scalar_prefetch = 0 : i64, scratch_operands = 0 : i64, tpu.core_type = #tpu.core_type<tc>} {
    %c0 = arith.constant 0 : index
    %c0_0 = arith.constant 0 : index
    %c0_1 = arith.constant 0 : index
    %0 = vector.load %arg0[%c0, %c0_0, %c0_1] : memref<2x32x128xf32, #tpu.memory_space<vmem>>, vector<2x32x128xf32>
    %cst = arith.constant dense<0.000000e+00> : vector<2x32xf32>
    %1 = vector.multi_reduction <add>, %0, %cst [2] : vector<2x32x128xf32> to vector<2x32xf32>
    %cst_2 = arith.constant 1.280000e+02 : f32
    %2 = vector.broadcast %cst_2 : f32 to vector<2x32xf32>
    %3 = arith.divf %1, %2 : vector<2x32xf32>
    %cst_3 = arith.constant dense<0xFF800000> : vector<2x32xf32>
    %4 = vector.multi_reduction <maximumf>, %0, %cst_3 [2] : vector<2x32x128xf32> to vector<2x32xf32>
    %5 = tpu.concatenate %3, %4 in 1 : vector<2x32xf32>, vector<2x32xf32> -> vector<2x64xf32>
    %c0_4 = arith.constant 0 : index
    %c0_5 = arith.constant 0 : index
    %6 = vector.load %arg1[%c0_4, %c0_5] : memref<64x32xf32, #tpu.memory_space<vmem>>, vector<64x32xf32>
    %cst_6 = arith.constant dense<0.000000e+00> : vector<2x32xf32>
    %7 = tpu.matmul %5, %6, %cst_6 {dimension_numbers = #tpu.dot_dimension_numbers<[1], [0], [0], [1], [0, 0, 1, 1], [], []>, precision = #tpu.contract_precision<fp32>} : vector<2x64xf32>, vector<64x32xf32>, vector<2x32xf32> -> vector<2x32xf32>
    %c0_7 = arith.constant 0 : index
    %c0_8 = arith.constant 0 : index
    %8 = memref.load %arg2[%c0_7, %c0_8] : memref<1x1xf32, #tpu.memory_space<smem>>
    %9 = vector.broadcast %8 : f32 to vector<2x32xf32>
    %10 = arith.addf %7, %9 : vector<2x32xf32>
    %11 = arith.negf %10 : vector<2x32xf32>
    %12 = math.exp %11 : vector<2x32xf32>
    %cst_9 = arith.constant 1.000000e+00 : f32
    %13 = vector.broadcast %cst_9 : f32 to vector<2x32xf32>
    %14 = arith.addf %13, %12 : vector<2x32xf32>
    %15 = arith.divf %13, %14 : vector<2x32xf32>
    %c0_10 = arith.constant 0 : index
    %c0_11 = arith.constant 0 : index
    %c0_12 = arith.constant 0 : index
    %16 = vector.load %arg0[%c0_10, %c0_11, %c0_12] : memref<2x32x128xf32, #tpu.memory_space<vmem>>, vector<2x32x128xf32>
    %17 = vector.shape_cast %15 : vector<2x32xf32> to vector<2x32x1xf32>
    %18 = vector.broadcast %17 : vector<2x32x1xf32> to vector<2x32x128xf32>
    %19 = arith.mulf %16, %18 : vector<2x32x128xf32>
    %c0_13 = arith.constant 0 : index
    %c0_14 = arith.constant 0 : index
    %c0_15 = arith.constant 0 : index
    %20 = vector.load %arg3[%c0_13, %c0_14, %c0_15] : memref<2x32x128xf32, #tpu.memory_space<vmem>>, vector<2x32x128xf32>
    tpu.vector_store %arg3[%c0_13, %c0_14, %c0_15], %19 {strides = array<i32>} : memref<2x32x128xf32, #tpu.memory_space<vmem>>, vector<2x32x128xf32>,
    return
  }
}

</mosaic_0001>

<llo_original>
// kernel: dseca_forward.1
$region0: #{dseca_forward.1}
  #allocation0 [shape = 'u32[]', space=smem, size = 0x4, offset = 0x4, fixed_abs, tag = 'smem constant byte address 0x4 - core index']
  #allocation1 [shape = 'u32[144,128]{1,0:T(1,128)}', space=vmem, size = 0x12000, scoped, tag = 'internal scratch']
  #allocation2 [shape = 'f32[1,1]{1,0:T(1,128)S(6)}', space=smem, size = 0x200, scoped, tag = 'scoped memory for dseca_forward.1']
  %s0 = inlined_call_operand.vmem [shape: f32[2,32,128], index: 0, kind: input, shape index: {}]
  %s1 = inlined_call_operand.vmem [shape: f32[64,32], index: 1, kind: input, shape index: {}]
  %s2 = inlined_call_operand.<no memory space> [shape: f32[1,1], index: 2, kind: input, shape index: {}]
  %s3 = inlined_call_operand.hbm [shape: f32[2,32,128], index: 3, kind: output, shape index: {}]
  %s4 = sld [smem:[#allocation0]]
  $region22: #{dseca_forward.1} parent=0
    _
  %s6 = ssub.s32 1, %s4
  %s7 = scalar_select 0, %s6, %s4
  %8 = sst [smem:[#allocation2]] %s2
  $region1: #{dseca_forward.1} parent=0
    #allocation3 [shape = 'u8[32768]{0}', space=vmem, size = 0x8000, scoped, tag = 'output window, operand 0, single buffered']
    #allocation4 [shape = 's32[1]{0}', space=sflag, size = 0x4, scoped, tag = 'scoped memory for dseca_forward.1']
    %9 = vsyncpa [#allocation4], 0
    // Predicated region
    $region2: #{dseca_forward.1} parent=1 // pred_check
      _
    $region3: #{dseca_forward.1} parent=1 // pred_check_branch
      %11 = sbr.rel (0) target = $region5
    $region4: #{dseca_forward.1} parent=1 // pred_region
      _
    $region5: #{dseca_forward.1} parent=1 // pred_fallthru
      _
    // Predicated region
    $region6: #{dseca_forward.1} parent=1 // pred_check
      _
    $region7: #{dseca_forward.1} parent=1 // pred_check_branch
      %13 = sbr.rel (0) target = $region9
    $region8: #{dseca_forward.1} parent=1 // pred_region
      _
    $region9: #{dseca_forward.1} parent=1 // pred_fallthru
      _
    // Predicated region
    $region10: #{dseca_forward.1} parent=1 // pred_check
      _
    $region11: #{dseca_forward.1} parent=1 // pred_check_branch
      %15 = sbr.rel (0) target = $region13
    $region12: #{dseca_forward.1} parent=1 // pred_region
      _
    $region13: #{dseca_forward.1} parent=1 // pred_fallthru
      _
    %v16 = vld [vmem:[%s0] sm:$0xff]
    %v17 = vld [vmem:[%s0 + $0x8] sm:$0xff]
    %v18 = vld [vmem:[%s0 + $0x10] sm:$0xff]
    %v19 = vld [vmem:[%s0 + $0x18] sm:$0xff]
    %v20 = vld [vmem:[%s0 + $0x20] sm:$0xff]
    %v21 = vld [vmem:[%s0 + $0x28] sm:$0xff]
    %v22 = vld [vmem:[%s0 + $0x30] sm:$0xff]
    %v23 = vld [vmem:[%s0 + $0x38] sm:$0xff]
    %24 = vadd.xlane.f32.xlu0 %v16
    %v25 = vpop.xlane.xlu0 %24
    %26 = vadd.xlane.f32.xlu0 %v17
    %v27 = vpop.xlane.xlu0 %26
    %28 = vadd.xlane.f32.xlu0 %v18
    %v29 = vpop.xlane.xlu0 %28
    %30 = vadd.xlane.f32.xlu0 %v19
    %v31 = vpop.xlane.xlu0 %30
    %32 = vadd.xlane.f32.xlu0 %v20
    %v33 = vpop.xlane.xlu0 %32
    %34 = vadd.xlane.f32.xlu0 %v21
    %v35 = vpop.xlane.xlu0 %34
    %36 = vadd.xlane.f32.xlu0 %v22
    %v37 = vpop.xlane.xlu0 %36
    %38 = vadd.xlane.f32.xlu0 %v23
    %v39 = vpop.xlane.xlu0 %38
    %v40 = vrcp.pop 128.0
    %v41 = vmul.f32 %v25, %v40
    %v42 = vmul.f32 %v27, %v40
    %v43 = vmul.f32 %v29, %v40
    %v44 = vmul.f32 %v31, %v40
    %v45 = vmul.f32 %v33, %v40
    %v46 = vmul.f32 %v35, %v40
    %v47 = vmul.f32 %v37, %v40
    %v48 = vmul.f32 %v39, %v40
    %49 = vmax.xlane.f32.xlu0 %v16
    %v50 = vpop.xlane.xlu0 %49
    %51 = vmax.xlane.f32.xlu0 %v17
    %v52 = vpop.xlane.xlu0 %51
    %53 = vmax.xlane.f32.xlu0 %v18
    %v54 = vpop.xlane.xlu0 %53
    %55 = vmax.xlane.f32.xlu0 %v19
    %v56 = vpop.xlane.xlu0 %55
    %57 = vmax.xlane.f32.xlu0 %v20
    %v58 = vpop.xlane.xlu0 %57
    %59 = vmax.xlane.f32.xlu0 %v21
    %v60 = vpop.xlane.xlu0 %59
    %61 = vmax.xlane.f32.xlu0 %v22
    %v62 = vpop.xlane.xlu0 %61
    %63 = vmax.xlane.f32.xlu0 %v23
    %v64 = vpop.xlane.xlu0 %63
    %v73 = vlaneseq
    %v74 = vand.u32 %v73, 127
    %v75 = vlaneseq
    %v76 = vshrl.u32 %v75, 7
    %v77 = vsub.s32 %v74, %v76
    %v78 = vrot.slane %v41, %v77
    %v79 = vadd.s32 %v74, 4294967288
    %v80 = vlaneseq
    %v81 = vshrl.u32 %v80, 7
    %v82 = vsub.s32 %v79, %v81
    %v83 = vrot.slane %v42, %v82
    %vm84 = vcmask 130112
    %v85 = vsel %vm84, %v83, %v78
    %v86 = vadd.s32 %v74, 4294967280
    %v87 = vlaneseq
    %v88 = vshrl.u32 %v87, 7
    %v89 = vsub.s32 %v86, %v88
    %v90 = vrot.slane %v43, %v89
    %vm91 = vcmask 195712
    %v92 = vsel %vm91, %v90, %v85
    %v93 = vadd.s32 %v74, 4294967272
    %v94 = vlaneseq
    %v95 = vshrl.u32 %v94, 7
    %v96 = vsub.s32 %v93, %v95
    %v97 = vrot.slane %v44, %v96
    %vm98 = vcmask 261312
    %v99 = vsel %vm98, %v97, %v92
    %v100 = vlaneseq
    %v101 = vshrl.u32 %v100, 7
    %v102 = vsub.s32 %v74, %v101
    %v103 = vrot.slane %v45, %v102
    %v104 = vlaneseq
    %v105 = vshrl.u32 %v104, 7
    %v106 = vsub.s32 %v79, %v105
    %v107 = vrot.slane %v46, %v106
    %v108 = vsel %vm84, %v107, %v103
    %v109 = vlaneseq
    %v110 = vshrl.u32 %v109, 7
    %v111 = vsub.s32 %v86, %v110
    %v112 = vrot.slane %v47, %v111
    %v113 = vsel %vm91, %v112, %v108
    %v114 = vlaneseq
    %v115 = vshrl.u32 %v114, 7
    %v116 = vsub.s32 %v93, %v115
    %v117 = vrot.slane %v48, %v116
    %v118 = vsel %vm98, %v117, %v113
    %vm119 = vcmask 1041409
    %v120 = vsel %vm119, %v118, %v99
    %v130 = vadd.s32 %v74, 4294967264
    %v131 = vlaneseq
    %v132 = vshrl.u32 %v131, 7
    %v133 = vsub.s32 %v130, %v132
    %v134 = vrot.slane %v50, %v133
    %v135 = vadd.s32 %v74, 4294967256
    %v136 = vlaneseq
    %v137 = vshrl.u32 %v136, 7
    %v138 = vsub.s32 %v135, %v137
    %v139 = vrot.slane %v52, %v138
    %vm140 = vcmask 392512
    %v141 = vsel %vm140, %v139, %v134
    %v142 = vadd.s32 %v74, 4294967248
    %v143 = vlaneseq
    %v144 = vshrl.u32 %v143, 7
    %v145 = vsub.s32 %v142, %v144
    %v146 = vrot.slane %v54, %v145
    %vm147 = vcmask 458112
    %v148 = vsel %vm147, %v146, %v141
    %v149 = vadd.s32 %v74, 4294967240
    %v150 = vlaneseq
    %v151 = vshrl.u32 %v150, 7
    %v152 = vsub.s32 %v149, %v151
    %v153 = vrot.slane %v56, %v152
    %vm154 = vcmask 523712
    %v155 = vsel %vm154, %v153, %v148
    %v156 = vlaneseq
    %v157 = vshrl.u32 %v156, 7
    %v158 = vsub.s32 %v130, %v157
    %v159 = vrot.slane %v58, %v158
    %v160 = vlaneseq
    %v161 = vshrl.u32 %v160, 7
    %v162 = vsub.s32 %v135, %v161
    %v163 = vrot.slane %v60, %v162
    %v164 = vsel %vm140, %v163, %v159
    %v165 = vlaneseq
    %v166 = vshrl.u32 %v165, 7
    %v167 = vsub.s32 %v142, %v166
    %v168 = vrot.slane %v62, %v167
    %v169 = vsel %vm147, %v168, %v164
    %v170 = vlaneseq
    %v171 = vshrl.u32 %v170, 7
    %v172 = vsub.s32 %v149, %v171
    %v173 = vrot.slane %v64, %v172
    %v174 = vsel %vm154, %v173, %v169
    %v175 = vsel %vm119, %v174, %v155
    %vm177 = vcmask 261120
    %v178 = vsel %vm177, %v120, %v175
    %v179 = vld [vmem:[%s1] sm:$0xff]
    %v180 = vld [vmem:[%s1 + $0x8] sm:$0xff]
    %v181 = vld [vmem:[%s1 + $0x10] sm:$0xff]
    %v182 = vld [vmem:[%s1 + $0x18] sm:$0xff]
    %v183 = vld [vmem:[%s1 + $0x20] sm:$0xff]
    %v184 = vld [vmem:[%s1 + $0x28] sm:$0xff]
    %v185 = vld [vmem:[%s1 + $0x30] sm:$0xff]
    %v186 = vld [vmem:[%s1 + $0x38] sm:$0xff]
    %s187 = sld [smem:[#allocation2]]
    %v188 = vstv %s187
    %vm189 = vcmask 523264
    %v191 = vsel %vm189, %v178, 0
    %193 = vmatprep.subr.mxu0 0.0
    %v194 = vand.u32 %v179, 4294901760
    %195 = vmatpush1.msra.mxu0 %v194
    %196 = vmatprep.subr.mxu0 0.0
    %v197 = vand.u32 %v180, 4294901760
    %198 = vmatpush1.msra.mxu0 %v197
    %199 = vmatprep.subr.mxu0 0.0
    %v200 = vand.u32 %v181, 4294901760
    %201 = vmatpush1.msra.mxu0 %v200
    %202 = vmatprep.subr.mxu0 0.0
    %v203 = vand.u32 %v182, 4294901760
    %204 = vmatpush1.msra.mxu0 %v203
    %205 = vmatprep.subr.mxu0 0.0
    %v206 = vand.u32 %v183, 4294901760
    %207 = vmatpush1.msra.mxu0 %v206
    %208 = vmatprep.subr.mxu0 0.0
    %v209 = vand.u32 %v184, 4294901760
    %210 = vmatpush1.msra.mxu0 %v209
    %211 = vmatprep.subr.mxu0 0.0
    %v212 = vand.u32 %v185, 4294901760
    %213 = vmatpush1.msra.mxu0 %v212
    %214 = vmatprep.subr.mxu0 0.0
    %v215 = vand.u32 %v186, 4294901760
    %216 = vmatpush1.msra.mxu0 %v215
    %217 = vmatprep.subr.mxu0 0.0
    %218 = vmatpush1.msra.mxu0 0.0
    %219 = vmatprep.subr.mxu0 0.0
    %220 = vmatpush1.msra.mxu0 0.0
    %221 = vmatprep.subr.mxu0 0.0
    %222 = vmatpush1.msra.mxu0 0.0
    %223 = vmatprep.subr.mxu0 0.0
    %224 = vmatpush1.msra.mxu0 0.0
    %225 = vmatprep.subr.mxu0 0.0
    %226 = vmatpush1.msra.mxu0 0.0
    %227 = vmatprep.subr.mxu0 0.0
    %228 = vmatpush1.msra.mxu0 0.0
    %229 = vmatprep.subr.mxu0 0.0
    %230 = vmatpush1.msra.mxu0 0.0
    %231 = vmatprep.subr.mxu0 0.0
    %232 = vmatpush1.msra.mxu0 0.0
    %233 = vmatprep.subr.mxu0 0.0
    %234 = vmatpush1.msra.mxu0 0.0
    %235 = vmatprep.subr.mxu0 0.0
    %236 = vmatpush1.msra.mxu0 0.0
    %237 = vmatprep.subr.mxu0 0.0
    %238 = vmatpush1.msra.mxu0 0.0
    %239 = vmatprep.subr.mxu0 0.0
    %240 = vmatpush1.msra.mxu0 0.0
    %241 = vmatprep.subr.mxu0 0.0
    %242 = vmatpush1.msra.mxu0 0.0
    %243 = vmatprep.subr.mxu0 0.0
    %244 = vmatpush1.msra.mxu0 0.0
    %245 = vmatprep.subr.mxu0 0.0
    %246 = vmatpush1.msra.mxu0 0.0
    %247 = vmatprep.subr.mxu0 0.0
    %248 = vmatpush1.msra.mxu0 0.0
    %249 = vmatprep.subr.mxu0 0.0
    %250 = vmatpush1.msra.mxu0 0.0
    %251 = vmatprep.subr.mxu0 0.0
    %252 = vmatpush1.msra.mxu0 0.0
    %253 = vmatprep.subr.mxu0 0.0
    %254 = vmatpush1.msra.mxu0 0.0
    %255 = vmatprep.subr.mxu0 0.0
    %256 = vmatpush1.msra.mxu0 0.0
    %257 = vmatprep.subr.mxu0 0.0
    %258 = vmatpush1.msra.mxu0 0.0
    %259 = vmatprep.subr.mxu0 0.0
    %260 = vmatpush1.msra.mxu0 0.0
    %261 = vmatprep.subr.mxu0 0.0
    %262 = vmatpush1.msra.mxu0 0.0
    %263 = vmatprep.subr.mxu0 0.0
    %264 = vmatpush1.msra.mxu0 0.0
    %265 = vmatprep.mubr.f32.mxu0 0.0
    %v266 = vand.u32 %v191, 4294901760
    %v267 = vsub.f32 %v191, %v266
    %v268 = vand.u32 %v267, 4294901760
    %v269 = vsub.f32 %v267, %v268
    %v270 = vand.u32 %v269, 4294901760
    %271 = vmatmul.mubr.f32.gmra.mrb[0].mxu0 %v270
    %v272 = vpop.f32.mrb[0].mxu0
    %v273 = vadd.f32 %v188, %v272
    %v274 = vpop.f32.mrb[0].mxu0
    %275 = vdwg.mxu0
    %276 = vmatprep.subr.mxu0 0.0
    %v277 = vand.u32 %v179, 4294901760
    %v278 = vsub.f32 %v179, %v277
    %v279 = vand.u32 %v278, 4294901760
    %v280 = vsub.f32 %v278, %v279
    %v281 = vand.u32 %v280, 4294901760
    %282 = vmatpush1.msra.mxu0 %v281
    %283 = vmatprep.subr.mxu0 0.0
    %v284 = vand.u32 %v180, 4294901760
    %v285 = vsub.f32 %v180, %v284
    %v286 = vand.u32 %v285, 4294901760
    %v287 = vsub.f32 %v285, %v286
    %v288 = vand.u32 %v287, 4294901760
    %289 = vmatpush1.msra.mxu0 %v288
    %290 = vmatprep.subr.mxu0 0.0
    %v291 = vand.u32 %v181, 4294901760
    %v292 = vsub.f32 %v181, %v291
    %v293 = vand.u32 %v292, 4294901760
    %v294 = vsub.f32 %v292, %v293
    %v295 = vand.u32 %v294, 4294901760
    %296 = vmatpush1.msra.mxu0 %v295
    %297 = vmatprep.subr.mxu0 0.0
    %v298 = vand.u32 %v182, 4294901760
    %v299 = vsub.f32 %v182, %v298
    %v300 = vand.u32 %v299, 4294901760
    %v301 = vsub.f32 %v299, %v300
    %v302 = vand.u32 %v301, 4294901760
    %303 = vmatpush1.msra.mxu0 %v302
    %304 = vmatprep.subr.mxu0 0.0
    %v305 = vand.u32 %v183, 4294901760
    %v306 = vsub.f32 %v183, %v305
    %v307 = vand.u32 %v306, 4294901760
    %v308 = vsub.f32 %v306, %v307
    %v309 = vand.u32 %v308, 4294901760
    %310 = vmatpush1.msra.mxu0 %v309
    %311 = vmatprep.subr.mxu0 0.0
    %v312 = vand.u32 %v184, 4294901760
    %v313 = vsub.f32 %v184, %v312
    %v314 = vand.u32 %v313, 4294901760
    %v315 = vsub.f32 %v313, %v314
    %v316 = vand.u32 %v315, 4294901760
    %317 = vmatpush1.msra.mxu0 %v316
    %318 = vmatprep.subr.mxu0 0.0
    %v319 = vand.u32 %v185, 4294901760
    %v320 = vsub.f32 %v185, %v319
    %v321 = vand.u32 %v320, 4294901760
    %v322 = vsub.f32 %v320, %v321
    %v323 = vand.u32 %v322, 4294901760
    %324 = vmatpush1.msra.mxu0 %v323
    %325 = vmatprep.subr.mxu0 0.0
    %v326 = vand.u32 %v186, 4294901760
    %v327 = vsub.f32 %v186, %v326
    %v328 = vand.u32 %v327, 4294901760
    %v329 = vsub.f32 %v327, %v328
    %v330 = vand.u32 %v329, 4294901760
    %331 = vmatpush1.msra.mxu0 %v330
    %332 = vmatprep.subr.mxu0 0.0
    %333 = vmatpush1.msra.mxu0 0.0
    %334 = vmatprep.subr.mxu0 0.0
    %335 = vmatpush1.msra.mxu0 0.0
    %336 = vmatprep.subr.mxu0 0.0
    %337 = vmatpush1.msra.mxu0 0.0
    %338 = vmatprep.subr.mxu0 0.0
    %339 = vmatpush1.msra.mxu0 0.0
    %340 = vmatprep.subr.mxu0 0.0
    %341 = vmatpush1.msra.mxu0 0.0
    %342 = vmatprep.subr.mxu0 0.0
    %343 = vmatpush1.msra.mxu0 0.0
    %344 = vmatprep.subr.mxu0 0.0
    %345 = vmatpush1.msra.mxu0 0.0
    %346 = vmatprep.subr.mxu0 0.0
    %347 = vmatpush1.msra.mxu0 0.0
    %348 = vmatprep.subr.mxu0 0.0
    %349 = vmatpush1.msra.mxu0 0.0
    %350 = vmatprep.subr.mxu0 0.0
    %351 = vmatpush1.msra.mxu0 0.0
    %352 = vmatprep.subr.mxu0 0.0
    %353 = vmatpush1.msra.mxu0 0.0
    %354 = vmatprep.subr.mxu0 0.0
    %355 = vmatpush1.msra.mxu0 0.0
    %356 = vmatprep.subr.mxu0 0.0
    %357 = vmatpush1.msra.mxu0 0.0
    %358 = vmatprep.subr.mxu0 0.0
    %359 = vmatpush1.msra.mxu0 0.0
    %360 = vmatprep.subr.mxu0 0.0
    %361 = vmatpush1.msra.mxu0 0.0
    %362 = vmatprep.subr.mxu0 0.0
    %363 = vmatpush1.msra.mxu0 0.0
    %364 = vmatprep.subr.mxu0 0.0
    %365 = vmatpush1.msra.mxu0 0.0
    %366 = vmatprep.subr.mxu0 0.0
    %367 = vmatpush1.msra.mxu0 0.0
    %368 = vmatprep.subr.mxu0 0.0
    %369 = vmatpush1.msra.mxu0 0.0
    %370 = vmatprep.subr.mxu0 0.0
    %371 = vmatpush1.msra.mxu0 0.0
    %372 = vmatprep.subr.mxu0 0.0
    %373 = vmatpush1.msra.mxu0 0.0
    %374 = vmatprep.subr.mxu0 0.0
    %375 = vmatpush1.msra.mxu0 0.0
    %376 = vmatprep.subr.mxu0 0.0
    %377 = vmatpush1.msra.mxu0 0.0
    %378 = vmatprep.subr.mxu0 0.0
    %379 = vmatpush1.msra.mxu0 0.0
    %380 = vmatprep.mubr.f32.mxu0 0.0
    %v381 = vand.u32 %v191, 4294901760
    %382 = vmatmul.mubr.f32.gmra.mrb[0].mxu0 %v381
    %v383 = vpop.f32.mrb[0].mxu0
    %v384 = vadd.f32 %v273, %v383
    %v385 = vpop.f32.mrb[0].mxu0
    %386 = vdwg.mxu0
    %387 = vmatprep.subr.mxu0 0.0
    %v388 = vand.u32 %v179, 4294901760
    %v389 = vsub.f32 %v179, %v388
    %390 = vmatpush1.msra.mxu0 %v389
    %391 = vmatprep.subr.mxu0 0.0
    %v392 = vand.u32 %v180, 4294901760
    %v393 = vsub.f32 %v180, %v392
    %394 = vmatpush1.msra.mxu0 %v393
    %395 = vmatprep.subr.mxu0 0.0
    %v396 = vand.u32 %v181, 4294901760
    %v397 = vsub.f32 %v181, %v396
    %398 = vmatpush1.msra.mxu0 %v397
    %399 = vmatprep.subr.mxu0 0.0
    %v400 = vand.u32 %v182, 4294901760
    %v401 = vsub.f32 %v182, %v400
    %402 = vmatpush1.msra.mxu0 %v401
    %403 = vmatprep.subr.mxu0 0.0
    %v404 = vand.u32 %v183, 4294901760
    %v405 = vsub.f32 %v183, %v404
    %406 = vmatpush1.msra.mxu0 %v405
    %407 = vmatprep.subr.mxu0 0.0
    %v408 = vand.u32 %v184, 4294901760
    %v409 = vsub.f32 %v184, %v408
    %410 = vmatpush1.msra.mxu0 %v409
    %411 = vmatprep.subr.mxu0 0.0
    %v412 = vand.u32 %v185, 4294901760
    %v413 = vsub.f32 %v185, %v412
    %414 = vmatpush1.msra.mxu0 %v413
    %415 = vmatprep.subr.mxu0 0.0
    %v416 = vand.u32 %v186, 4294901760
    %v417 = vsub.f32 %v186, %v416
    %418 = vmatpush1.msra.mxu0 %v417
    %419 = vmatprep.subr.mxu0 0.0
    %420 = vmatpush1.msra.mxu0 0.0
    %421 = vmatprep.subr.mxu0 0.0
    %422 = vmatpush1.msra.mxu0 0.0
    %423 = vmatprep.subr.mxu0 0.0
    %424 = vmatpush1.msra.mxu0 0.0
    %425 = vmatprep.subr.mxu0 0.0
    %426 = vmatpush1.msra.mxu0 0.0
    %427 = vmatprep.subr.mxu0 0.0
    %428 = vmatpush1.msra.mxu0 0.0
    %429 = vmatprep.subr.mxu0 0.0
    %430 = vmatpush1.msra.mxu0 0.0
    %431 = vmatprep.subr.mxu0 0.0
    %432 = vmatpush1.msra.mxu0 0.0
    %433 = vmatprep.subr.mxu0 0.0
    %434 = vmatpush1.msra.mxu0 0.0
    %435 = vmatprep.subr.mxu0 0.0
    %436 = vmatpush1.msra.mxu0 0.0
    %437 = vmatprep.subr.mxu0 0.0
    %438 = vmatpush1.msra.mxu0 0.0
    %439 = vmatprep.subr.mxu0 0.0
    %440 = vmatpush1.msra.mxu0 0.0
    %441 = vmatprep.subr.mxu0 0.0
    %442 = vmatpush1.msra.mxu0 0.0
    %443 = vmatprep.subr.mxu0 0.0
    %444 = vmatpush1.msra.mxu0 0.0
    %445 = vmatprep.subr.mxu0 0.0
    %446 = vmatpush1.msra.mxu0 0.0
    %447 = vmatprep.subr.mxu0 0.0
    %448 = vmatpush1.msra.mxu0 0.0
    %449 = vmatprep.subr.mxu0 0.0
    %450 = vmatpush1.msra.mxu0 0.0
    %451 = vmatprep.subr.mxu0 0.0
    %452 = vmatpush1.msra.mxu0 0.0
    %453 = vmatprep.subr.mxu0 0.0
    %454 = vmatpush1.msra.mxu0 0.0
    %455 = vmatprep.subr.mxu0 0.0
    %456 = vmatpush1.msra.mxu0 0.0
    %457 = vmatprep.subr.mxu0 0.0
    %458 = vmatpush1.msra.mxu0 0.0
    %459 = vmatprep.subr.mxu0 0.0
    %460 = vmatpush1.msra.mxu0 0.0
    %461 = vmatprep.subr.mxu0 0.0
    %462 = vmatpush1.msra.mxu0 0.0
    %463 = vmatprep.subr.mxu0 0.0
    %464 = vmatpush1.msra.mxu0 0.0
    %465 = vmatprep.subr.mxu0 0.0
    %466 = vmatpush1.msra.mxu0 0.0
    %467 = vmatprep.mubr.f32.mxu0 0.0
    %v468 = vand.u32 %v191, 4294901760
    %v469 = vsub.f32 %v191, %v468
    %470 = vmatmul.mubr.f32.gmra.mrb[0].mxu0 %v469
    %v471 = vpop.f32.mrb[0].mxu0
    %v472 = vadd.f32 %v384, %v471
    %v473 = vpop.f32.mrb[0].mxu0
    %474 = vdwg.mxu0
    %475 = vmatprep.subr.mxu0 0.0
    %v476 = vand.u32 %v179, 4294901760
    %477 = vmatpush1.msra.mxu0 %v476
    %478 = vmatprep.subr.mxu0 0.0
    %v479 = vand.u32 %v180, 4294901760
    %480 = vmatpush1.msra.mxu0 %v479
    %481 = vmatprep.subr.mxu0 0.0
    %v482 = vand.u32 %v181, 4294901760
    %483 = vmatpush1.msra.mxu0 %v482
    %484 = vmatprep.subr.mxu0 0.0
    %v485 = vand.u32 %v182, 4294901760
    %486 = vmatpush1.msra.mxu0 %v485
    %487 = vmatprep.subr.mxu0 0.0
    %v488 = vand.u32 %v183, 4294901760
    %489 = vmatpush1.msra.mxu0 %v488
    %490 = vmatprep.subr.mxu0 0.0
    %v491 = vand.u32 %v184, 4294901760
    %492 = vmatpush1.msra.mxu0 %v491
    %493 = vmatprep.subr.mxu0 0.0
    %v494 = vand.u32 %v185, 4294901760
    %495 = vmatpush1.msra.mxu0 %v494
    %496 = vmatprep.subr.mxu0 0.0
    %v497 = vand.u32 %v186, 4294901760
    %498 = vmatpush1.msra.mxu0 %v497
    %499 = vmatprep.subr.mxu0 0.0
    %500 = vmatpush1.msra.mxu0 0.0
    %501 = vmatprep.subr.mxu0 0.0
    %502 = vmatpush1.msra.mxu0 0.0
    %503 = vmatprep.subr.mxu0 0.0
    %504 = vmatpush1.msra.mxu0 0.0
    %505 = vmatprep.subr.mxu0 0.0
    %506 = vmatpush1.msra.mxu0 0.0
    %507 = vmatprep.subr.mxu0 0.0
    %508 = vmatpush1.msra.mxu0 0.0
    %509 = vmatprep.subr.mxu0 0.0
    %510 = vmatpush1.msra.mxu0 0.0
    %511 = vmatprep.subr.mxu0 0.0
    %512 = vmatpush1.msra.mxu0 0.0
    %513 = vmatprep.subr.mxu0 0.0
    %514 = vmatpush1.msra.mxu0 0.0
    %515 = vmatprep.subr.mxu0 0.0
    %516 = vmatpush1.msra.mxu0 0.0
    %517 = vmatprep.subr.mxu0 0.0
    %518 = vmatpush1.msra.mxu0 0.0
    %519 = vmatprep.subr.mxu0 0.0
    %520 = vmatpush1.msra.mxu0 0.0
    %521 = vmatprep.subr.mxu0 0.0
    %522 = vmatpush1.msra.mxu0 0.0
    %523 = vmatprep.subr.mxu0 0.0
    %524 = vmatpush1.msra.mxu0 0.0
    %525 = vmatprep.subr.mxu0 0.0
    %526 = vmatpush1.msra.mxu0 0.0
    %527 = vmatprep.subr.mxu0 0.0
    %528 = vmatpush1.msra.mxu0 0.0
    %529 = vmatprep.subr.mxu0 0.0
    %530 = vmatpush1.msra.mxu0 0.0
    %531 = vmatprep.subr.mxu0 0.0
    %532 = vmatpush1.msra.mxu0 0.0
    %533 = vmatprep.subr.mxu0 0.0
    %534 = vmatpush1.msra.mxu0 0.0
    %535 = vmatprep.subr.mxu0 0.0
    %536 = vmatpush1.msra.mxu0 0.0
    %537 = vmatprep.subr.mxu0 0.0
    %538 = vmatpush1.msra.mxu0 0.0
    %539 = vmatprep.subr.mxu0 0.0
    %540 = vmatpush1.msra.mxu0 0.0
    %541 = vmatprep.subr.mxu0 0.0
    %542 = vmatpush1.msra.mxu0 0.0
    %543 = vmatprep.subr.mxu0 0.0
    %544 = vmatpush1.msra.mxu0 0.0
    %545 = vmatprep.subr.mxu0 0.0
    %546 = vmatpush1.msra.mxu0 0.0
    %547 = vmatprep.mubr.f32.mxu0 0.0
    %v548 = vand.u32 %v191, 4294901760
    %v549 = vsub.f32 %v191, %v548
    %v550 = vand.u32 %v549, 4294901760
    %551 = vmatmul.mubr.f32.gmra.mrb[0].mxu0 %v550
    %v552 = vpop.f32.mrb[0].mxu0
    %v553 = vadd.f32 %v472, %v552
    %v554 = vpop.f32.mrb[0].mxu0
    %555 = vdwg.mxu0
    %556 = vmatprep.subr.mxu0 0.0
    %v557 = vand.u32 %v179, 4294901760
    %v558 = vsub.f32 %v179, %v557
    %v559 = vand.u32 %v558, 4294901760
    %560 = vmatpush1.msra.mxu0 %v559
    %561 = vmatprep.subr.mxu0 0.0
    %v562 = vand.u32 %v180, 4294901760
    %v563 = vsub.f32 %v180, %v562
    %v564 = vand.u32 %v563, 4294901760
    %565 = vmatpush1.msra.mxu0 %v564
    %566 = vmatprep.subr.mxu0 0.0
    %v567 = vand.u32 %v181, 4294901760
    %v568 = vsub.f32 %v181, %v567
    %v569 = vand.u32 %v568, 4294901760
    %570 = vmatpush1.msra.mxu0 %v569
    %571 = vmatprep.subr.mxu0 0.0
    %v572 = vand.u32 %v182, 4294901760
    %v573 = vsub.f32 %v182, %v572
    %v574 = vand.u32 %v573, 4294901760
    %575 = vmatpush1.msra.mxu0 %v574
    %576 = vmatprep.subr.mxu0 0.0
    %v577 = vand.u32 %v183, 4294901760
    %v578 = vsub.f32 %v183, %v577
    %v579 = vand.u32 %v578, 4294901760
    %580 = vmatpush1.msra.mxu0 %v579
    %581 = vmatprep.subr.mxu0 0.0
    %v582 = vand.u32 %v184, 4294901760
    %v583 = vsub.f32 %v184, %v582
    %v584 = vand.u32 %v583, 4294901760
    %585 = vmatpush1.msra.mxu0 %v584
    %586 = vmatprep.subr.mxu0 0.0
    %v587 = vand.u32 %v185, 4294901760
    %v588 = vsub.f32 %v185, %v587
    %v589 = vand.u32 %v588, 4294901760
    %590 = vmatpush1.msra.mxu0 %v589
    %591 = vmatprep.subr.mxu0 0.0
    %v592 = vand.u32 %v186, 4294901760
    %v593 = vsub.f32 %v186, %v592
    %v594 = vand.u32 %v593, 4294901760
    %595 = vmatpush1.msra.mxu0 %v594
    %596 = vmatprep.subr.mxu0 0.0
    %597 = vmatpush1.msra.mxu0 0.0
    %598 = vmatprep.subr.mxu0 0.0
    %599 = vmatpush1.msra.mxu0 0.0
    %600 = vmatprep.subr.mxu0 0.0
    %601 = vmatpush1.msra.mxu0 0.0
    %602 = vmatprep.subr.mxu0 0.0
    %603 = vmatpush1.msra.mxu0 0.0
    %604 = vmatprep.subr.mxu0 0.0
    %605 = vmatpush1.msra.mxu0 0.0
    %606 = vmatprep.subr.mxu0 0.0
    %607 = vmatpush1.msra.mxu0 0.0
    %608 = vmatprep.subr.mxu0 0.0
    %609 = vmatpush1.msra.mxu0 0.0
    %610 = vmatprep.subr.mxu0 0.0
    %611 = vmatpush1.msra.mxu0 0.0
    %612 = vmatprep.subr.mxu0 0.0
    %613 = vmatpush1.msra.mxu0 0.0
    %614 = vmatprep.subr.mxu0 0.0
    %615 = vmatpush1.msra.mxu0 0.0
    %616 = vmatprep.subr.mxu0 0.0
    %617 = vmatpush1.msra.mxu0 0.0
    %618 = vmatprep.subr.mxu0 0.0
    %619 = vmatpush1.msra.mxu0 0.0
    %620 = vmatprep.subr.mxu0 0.0
    %621 = vmatpush1.msra.mxu0 0.0
    %622 = vmatprep.subr.mxu0 0.0
    %623 = vmatpush1.msra.mxu0 0.0
    %624 = vmatprep.subr.mxu0 0.0
    %625 = vmatpush1.msra.mxu0 0.0
    %626 = vmatprep.subr.mxu0 0.0
    %627 = vmatpush1.msra.mxu0 0.0
    %628 = vmatprep.subr.mxu0 0.0
    %629 = vmatpush1.msra.mxu0 0.0
    %630 = vmatprep.subr.mxu0 0.0
    %631 = vmatpush1.msra.mxu0 0.0
    %632 = vmatprep.subr.mxu0 0.0
    %633 = vmatpush1.msra.mxu0 0.0
    %634 = vmatprep.subr.mxu0 0.0
    %635 = vmatpush1.msra.mxu0 0.0
    %636 = vmatprep.subr.mxu0 0.0
    %637 = vmatpush1.msra.mxu0 0.0
    %638 = vmatprep.subr.mxu0 0.0
    %639 = vmatpush1.msra.mxu0 0.0
    %640 = vmatprep.subr.mxu0 0.0
    %641 = vmatpush1.msra.mxu0 0.0
    %642 = vmatprep.subr.mxu0 0.0
    %643 = vmatpush1.msra.mxu0 0.0
    %644 = vmatprep.mubr.f32.mxu0 0.0
    %v645 = vand.u32 %v191, 4294901760
    %646 = vmatmul.mubr.f32.gmra.mrb[0].mxu0 %v645
    %v647 = vpop.f32.mrb[0].mxu0
    %v648 = vadd.f32 %v553, %v647
    %v649 = vpop.f32.mrb[0].mxu0
    %650 = vdwg.mxu0
    %651 = vmatprep.subr.mxu0 0.0
    %v652 = vand.u32 %v179, 4294901760
    %653 = vmatpush1.msra.mxu0 %v652
    %654 = vmatprep.subr.mxu0 0.0
    %v655 = vand.u32 %v180, 4294901760
    %656 = vmatpush1.msra.mxu0 %v655
    %657 = vmatprep.subr.mxu0 0.0
    %v658 = vand.u32 %v181, 4294901760
    %659 = vmatpush1.msra.mxu0 %v658
    %660 = vmatprep.subr.mxu0 0.0
    %v661 = vand.u32 %v182, 4294901760
    %662 = vmatpush1.msra.mxu0 %v661
    %663 = vmatprep.subr.mxu0 0.0
    %v664 = vand.u32 %v183, 4294901760
    %665 = vmatpush1.msra.mxu0 %v664
    %666 = vmatprep.subr.mxu0 0.0
    %v667 = vand.u32 %v184, 4294901760
    %668 = vmatpush1.msra.mxu0 %v667
    %669 = vmatprep.subr.mxu0 0.0
    %v670 = vand.u32 %v185, 4294901760
    %671 = vmatpush1.msra.mxu0 %v670
    %672 = vmatprep.subr.mxu0 0.0
    %v673 = vand.u32 %v186, 4294901760
    %674 = vmatpush1.msra.mxu0 %v673
    %675 = vmatprep.subr.mxu0 0.0
    %676 = vmatpush1.msra.mxu0 0.0
    %677 = vmatprep.subr.mxu0 0.0
    %678 = vmatpush1.msra.mxu0 0.0
    %679 = vmatprep.subr.mxu0 0.0
    %680 = vmatpush1.msra.mxu0 0.0
    %681 = vmatprep.subr.mxu0 0.0
    %682 = vmatpush1.msra.mxu0 0.0
    %683 = vmatprep.subr.mxu0 0.0
    %684 = vmatpush1.msra.mxu0 0.0
    %685 = vmatprep.subr.mxu0 0.0
    %686 = vmatpush1.msra.mxu0 0.0
    %687 = vmatprep.subr.mxu0 0.0
    %688 = vmatpush1.msra.mxu0 0.0
    %689 = vmatprep.subr.mxu0 0.0
    %690 = vmatpush1.msra.mxu0 0.0
    %691 = vmatprep.subr.mxu0 0.0
    %692 = vmatpush1.msra.mxu0 0.0
    %693 = vmatprep.subr.mxu0 0.0
    %694 = vmatpush1.msra.mxu0 0.0
    %695 = vmatprep.subr.mxu0 0.0
    %696 = vmatpush1.msra.mxu0 0.0
    %697 = vmatprep.subr.mxu0 0.0
    %698 = vmatpush1.msra.mxu0 0.0
    %699 = vmatprep.subr.mxu0 0.0
    %700 = vmatpush1.msra.mxu0 0.0
    %701 = vmatprep.subr.mxu0 0.0
    %702 = vmatpush1.msra.mxu0 0.0
    %703 = vmatprep.subr.mxu0 0.0
    %704 = vmatpush1.msra.mxu0 0.0
    %705 = vmatprep.subr.mxu0 0.0
    %706 = vmatpush1.msra.mxu0 0.0
    %707 = vmatprep.subr.mxu0 0.0
    %708 = vmatpush1.msra.mxu0 0.0
    %709 = vmatprep.subr.mxu0 0.0
    %710 = vmatpush1.msra.mxu0 0.0
    %711 = vmatprep.subr.mxu0 0.0
    %712 = vmatpush1.msra.mxu0 0.0
    %713 = vmatprep.subr.mxu0 0.0
    %714 = vmatpush1.msra.mxu0 0.0
    %715 = vmatprep.subr.mxu0 0.0
    %716 = vmatpush1.msra.mxu0 0.0
    %717 = vmatprep.subr.mxu0 0.0
    %718 = vmatpush1.msra.mxu0 0.0
    %719 = vmatprep.subr.mxu0 0.0
    %720 = vmatpush1.msra.mxu0 0.0
    %721 = vmatprep.subr.mxu0 0.0
    %722 = vmatpush1.msra.mxu0 0.0
    %723 = vmatprep.mubr.f32.mxu0 0.0
    %v724 = vand.u32 %v191, 4294901760
    %725 = vmatmul.mubr.f32.gmra.mrb[0].mxu0 %v724
    %v726 = vpop.f32.mrb[0].mxu0
    %v727 = vadd.f32 %v648, %v726
    %v728 = vpop.f32.mrb[0].mxu0
    %729 = vdwg.mxu0
    %v730 = vxor.u32 %v727, 2147483648
    %v731 = vmul.f32 %v730, 1.442695
    %v732 = vpow.pop %v731
    %v733 = vadd.f32 %v732, 1.0
    %v734 = vrcp.pop %v733
    %v735 = vmul.f32 1.0, %v734
    %v736 = vlaneseq
    %v737 = vshrl.u32 %v736, 7
    %v738 = vsub.s32 0, %v737
    %v739 = vrot.slane %v735, %v738
    %741 = vbcast.lane.b32.xlu0 %v739, 256
    %v742 = vpop.permute.xlu0 %741
    %s744 = sor.u32 256, 8
    %745 = vbcast.lane.b32.xlu0 %v739, %s744
    %v746 = vpop.permute.xlu0 %745
    %s748 = sor.u32 256, 16
    %749 = vbcast.lane.b32.xlu0 %v739, %s748
    %v750 = vpop.permute.xlu0 %749
    %s752 = sor.u32 256, 24
    %753 = vbcast.lane.b32.xlu0 %v739, %s752
    %v754 = vpop.permute.xlu0 %753
    %v755 = vlaneseq
    %v756 = vshrl.u32 %v755, 7
    %v757 = vsub.s32 1, %v756
    %v758 = vrot.slane %v735, %v757
    %760 = vbcast.lane.b32.xlu0 %v758, 256
    %v761 = vpop.permute.xlu0 %760
    %s763 = sor.u32 256, 8
    %764 = vbcast.lane.b32.xlu0 %v758, %s763
    %v765 = vpop.permute.xlu0 %764
    %s767 = sor.u32 256, 16
    %768 = vbcast.lane.b32.xlu0 %v758, %s767
    %v769 = vpop.permute.xlu0 %768
    %s771 = sor.u32 256, 24
    %772 = vbcast.lane.b32.xlu0 %v758, %s771
    %v773 = vpop.permute.xlu0 %772
    %v774 = vmul.f32 %v16, %v742
    %v775 = vmul.f32 %v17, %v746
    %v776 = vmul.f32 %v18, %v750
    %v777 = vmul.f32 %v19, %v754
    %v778 = vmul.f32 %v20, %v761
    %v779 = vmul.f32 %v21, %v765
    %v780 = vmul.f32 %v22, %v769
    %v781 = vmul.f32 %v23, %v773
    %782 = vst [vmem:[#allocation3] sm:$0xff] %v774
    %783 = vst [vmem:[#allocation3 + $0x8] sm:$0xff] %v775
    %784 = vst [vmem:[#allocation3 + $0x10] sm:$0xff] %v776
    %785 = vst [vmem:[#allocation3 + $0x18] sm:$0xff] %v777
    %786 = vst [vmem:[#allocation3 + $0x20] sm:$0xff] %v778
    %787 = vst [vmem:[#allocation3 + $0x28] sm:$0xff] %v779
    %788 = vst [vmem:[#allocation3 + $0x30] sm:$0xff] %v780
    %789 = vst [vmem:[#allocation3 + $0x38] sm:$0xff] %v781
    // Predicated region
    $region14: #{dseca_forward.1} parent=1 // pred_check
      _
    $region15: #{dseca_forward.1} parent=1 // pred_check_branch
      %791 = sbr.rel (0) target = $region17
    $region16: #{dseca_forward.1} parent=1 // pred_region
      %s793 = ssub.s32 1024, 1024
      %794 = vsyncadd [#allocation4], %s793
      %s795 = sshll.u32 [#allocation3], 4
      %s796 = int_to_ptr.vmem [resolvable:$true] %s795
      %801 = dma.vmem_to_hbm [thread:$0]  %s796, 1024, %s3, [#allocation4], 128, 128, 8
    $region17: #{dseca_forward.1} parent=1 // pred_fallthru
      _
    // Predicated region
    $region18: #{dseca_forward.1} parent=1 // pred_check
      _
    $region19: #{dseca_forward.1} parent=1 // pred_check_branch
      %803 = sbr.rel (0) target = $region21
    $region20: #{dseca_forward.1} parent=1 // pred_region
      %804 = dma.done [#allocation4], 1024
    $region21: #{dseca_forward.1} parent=1 // pred_fallthru
      _
    %805 = vsyncpa [#allocation4], 1

</llo_original>
